<compile_context>
chip_gen: v7x
topology: tpu7x:2x2x1
jax: 0.10.0
libtpu: 0.0.40
codegen_flags: <defaults>
</compile_context>

<pallas_src>
import functools
import math

import jax
import jax.numpy as jnp
from jax.experimental import pallas as pl
from jax.experimental.pallas import tpu as pltpu


def _cross_stitch_kernel(num_tasks, acc_dtype, w_ref, *refs):
    """w_ref: (T, T) f32 in SMEM; refs = T input tiles then T output tiles (VMEM).

    out_t = sum_k in_k * w[k, t].  The cast to the accumulation dtype happens
    at the point of use so Mosaic fuses it at vreg granularity instead of
    materializing T full-tile converted copies.
    """
    in_refs = refs[:num_tasks]
    out_refs = refs[num_tasks:]
    for t in range(num_tasks):                      # T is tiny -> fully unrolled
        acc = in_refs[0][...].astype(acc_dtype) * w_ref[0, t].astype(acc_dtype)
        for k in range(1, num_tasks):
            acc = acc + in_refs[k][...].astype(acc_dtype) * w_ref[k, t].astype(acc_dtype)
        out_refs[t][...] = acc.astype(out_refs[t].dtype)


@functools.lru_cache(maxsize=1)
def _device_profile():
    """Generation-aware VMEM budget / scoped limit / tiny-tensor cut-over."""
    kind = ""
    try:
        kind = jax.devices()[0].device_kind.lower()
    except Exception:
        pass
    cap = 64 << 20  # unknown -> assume the smallest (v7x-class) physical VMEM
    try:
        cap = int(pltpu.get_tpu_info().vmem_capacity_bytes)
    except Exception:
        pass
    if "v5" in kind:
        # Stay under v5e's 16 MiB scoped-VMEM default; don't override it.
        return dict(vmem_budget=12 << 20, vmem_limit=None,
                    min_kernel_bytes=1 << 20, low_precision_ok=False)
    if cap <= (64 << 20):
        # v7x-class: 64 MiB physical VMEM, ~3.2 TB/s HBM -> bigger blocks and a
        # higher cut-over to the XLA fallback for tiny tensors.
        return dict(vmem_budget=24 << 20, vmem_limit=48 << 20,
                    min_kernel_bytes=4 << 20, low_precision_ok=True)
    # v6e-class: 128 MiB physical VMEM.
    return dict(vmem_budget=32 << 20, vmem_limit=64 << 20,
                min_kernel_bytes=2 << 20, low_precision_ok=True)


def _lane_dense_layout(n_elems):
    """Pick a (rows, lanes) factorization with lanes a large multiple of 128.

    Returns None if no lane-dense factorization exists (caller falls back to
    XLA rather than using a sublane-sparse (1, N) single-block layout).
    """
    for lanes in (1024, 512, 256, 128):
        if n_elems % lanes == 0:
            return n_elems // lanes, lanes
    return None


def _pick_block_rows(rows, lanes, itemsize, num_tasks, vmem_budget, min_grid_steps=4):
    """Biggest sublane-aligned block that fits the budget, keeping >=2 grid steps."""
    row_align = max(8, 32 // itemsize)          # 8 f32 / 16 bf16 / 32 int8 sublanes
    if rows <= row_align:
        return rows                             # single full-dim block (always legal)
    # Double-buffered pipeline holds 2 copies of every input and output block.
    per_row_bytes = 2 * (2 * num_tasks) * lanes * itemsize
    bm_budget = max(row_align, vmem_budget // per_row_bytes)
    # Keep >= min_grid_steps blocks: v7x megacore needs blocks to split across
    # its 2 TensorCores and a 1-step grid also disables double-buffering.
    bm_steps = max(row_align, rows // min_grid_steps)
    bm = min(rows, bm_budget, bm_steps)
    bm = max(row_align, (bm // row_align) * row_align)
    return min(bm, rows)


def _xla_cross_stitch(inputs, w):
    """Small / awkward shapes: let XLA fuse the mixing einsum."""
    dtype = inputs[0].dtype
    x = jnp.stack(inputs, axis=-1).astype(jnp.float32)
    stitched = jnp.einsum("...t,tk->...k", x, w.astype(jnp.float32))
    return [stitched[..., t].astype(dtype) for t in range(len(inputs))]


def cross_stitch(inputs, w, *, block_rows=None, min_bytes_for_kernel=None,
                 low_precision_accum=False, donate_inputs=False):
    """Cross-stitch mixing: out_t = sum_k inputs[k] * w[k, t].

    inputs: list of T arrays with identical shape/dtype (e.g. (n, batch, seq)).
    w:      (T, T) mixing matrix (columns sum to 1).
    Returns a list of T arrays with the original shape.
    """
    num_tasks = len(inputs)
    shape = inputs[0].shape
    dtype = inputs[0].dtype
    for x in inputs:
        if x.shape != shape or x.dtype != dtype:
            raise ValueError("all cross-stitch inputs must share shape and dtype")
    if w.shape != (num_tasks, num_tasks):
        raise ValueError("w must be (num_tasks, num_tasks)")

    prof = _device_profile()
    if min_bytes_for_kernel is None:
        min_bytes_for_kernel = prof["min_kernel_bytes"]

    n_elems = math.prod(shape)
    itemsize = jnp.dtype(dtype).itemsize

    # Tiny tensors: pallas_call launch + per-step overhead dwarfs the HBM traffic.
    if num_tasks * n_elems * itemsize < min_bytes_for_kernel:
        return _xla_cross_stitch(inputs, w)

    layout = _lane_dense_layout(n_elems)
    if layout is None:
        # Not a multiple of 128 elements: a (1, N) block would be sublane-sparse,
        # single-step and can OOM v7x's 64 MiB VMEM; padding would add a full
        # HBM copy per input.  Let XLA fuse these shapes instead.
        return _xla_cross_stitch(inputs, w)
    rows, lanes = layout
    xs = [jnp.reshape(x, (rows, lanes)) for x in inputs]   # contiguous -> free

    bm = block_rows or _pick_block_rows(rows, lanes, itemsize, num_tasks,
                                        prof["vmem_budget"])
    grid = (pl.cdiv(rows, bm),)      # uneven tail block handled by Pallas masking

    # f32 accumulation by default; bf16 accumulation only on opt-in and on chips
    # with a bf16 VALU (v6e / v7x; never on v5e).
    acc_dtype = jnp.float32
    if low_precision_accum and prof["low_precision_ok"] and dtype == jnp.bfloat16:
        acc_dtype = jnp.bfloat16

    tile_spec = pl.BlockSpec((bm, lanes), lambda i: (i, 0))

    call_kwargs = {}
    if donate_inputs:
        # Operand 0 is w; input t is operand 1 + t -> alias onto output t.
        call_kwargs["input_output_aliases"] = {1 + t: t for t in range(num_tasks)}

    compiler_kwargs = dict(dimension_semantics=("parallel",))   # megacore split on v7x
    if prof["vmem_limit"] is not None:
        compiler_kwargs["vmem_limit_bytes"] = prof["vmem_limit"]

    outs = pl.pallas_call(
        functools.partial(_cross_stitch_kernel, num_tasks, acc_dtype),
        out_shape=tuple(jax.ShapeDtypeStruct((rows, lanes), dtype)
                        for _ in range(num_tasks)),
        grid_spec=pltpu.PrefetchScalarGridSpec(
            num_scalar_prefetch=0,
            grid=grid,
            in_specs=[pl.BlockSpec(memory_space=pltpu.MemorySpace.SMEM)]
                     + [tile_spec] * num_tasks,
            out_specs=[tile_spec] * num_tasks,
        ),
        compiler_params=pltpu.CompilerParams(**compiler_kwargs),
        **call_kwargs,
    )(w.astype(jnp.float32), *xs)

    return [jnp.reshape(o, shape) for o in outs]


def make_cross_stitch_weight(key, num_tasks=2):
    # matches torch: uniform(0,1) then column-normalize (sum over dim 0 == 1)
    u = jax.random.uniform(key, (num_tasks, num_tasks), dtype=jnp.float32,
                           minval=0.0, maxval=1.0)
    return u / jnp.sum(u, axis=0, keepdims=True)


if __name__ == "__main__":
    key = jax.random.PRNGKey(0)
    k_w, k_a, k_b = jax.random.split(key, 3)

    num_tasks = 2
    n, batch, seq = 2, 8, 1024      # each task input is (n, batch, seq)

    w = make_cross_stitch_weight(k_w, num_tasks)
    inputs = [
        jax.random.normal(k_a, (n, batch, seq), dtype=jnp.float32),
        jax.random.normal(k_b, (n, batch, seq), dtype=jnp.float32),
    ]

    # Force the Pallas path at this small demo size; the block size is
    # auto-picked (resolves to a sublane-aligned multi-step grid, exercising
    # the pipelined tiling without hand-forcing a tiny block).
    outs = cross_stitch(inputs, w, min_bytes_for_kernel=0)
    outs = [jax.block_until_ready(o) for o in outs]

    # pure-JAX reference: out_t = sum_k inputs[k] * w[k, t]
    x_ref = jnp.stack(inputs, axis=-1)                    # (n, batch, seq, T)
    stitched = jnp.einsum("nbst,tk->nbsk", x_ref, w)
    for t in range(num_tasks):
        assert outs[t].shape == (n, batch, seq)
        assert jnp.allclose(outs[t], stitched[..., t], atol=1e-5, rtol=1e-5)

    # Also exercise the sub-32-bit path (per-use upcast, 16-row sublane alignment).
    bf_inputs = [x.astype(jnp.bfloat16) for x in inputs]
    bf_outs = cross_stitch(bf_inputs, w, min_bytes_for_kernel=0)
    bf_outs = [jax.block_until_ready(o) for o in bf_outs]
    bf_ref = jnp.einsum("nbst,tk->nbsk",
                        jnp.stack(bf_inputs, axis=-1).astype(jnp.float32), w)
    for t in range(num_tasks):
        assert jnp.allclose(bf_outs[t].astype(jnp.float32), bf_ref[..., t],
                            atol=3e-2, rtol=3e-2)

    print("KERNEL_OK")
</pallas_src>

<mosaic_0001>
module attributes {stable_mosaic.version = 11 : i64} {
  func.func @_cross_stitch_kernel(%arg0: i32, %arg1: memref<2x2xf32, #tpu.memory_space<smem>>, %arg2: memref<8x1024xf32, #tpu.memory_space<vmem>>, %arg3: memref<8x1024xf32, #tpu.memory_space<vmem>>, %arg4: memref<8x1024xf32, #tpu.memory_space<vmem>>, %arg5: memref<8x1024xf32, #tpu.memory_space<vmem>>) attributes {dimension_semantics = [#tpu.dimension_semantics<parallel>], iteration_bounds = array<i64: 2>, scalar_prefetch = 0 : i64, scratch_operands = 0 : i64, tpu.core_type = #tpu.core_type<tc>, window_params = [{transform_indices = @transform_0, window_bounds = array<i64: 2, 2>}, {transform_indices = @transform_1, window_bounds = array<i64: 8, 1024>}, {transform_indices = @transform_2, window_bounds = array<i64: 8, 1024>}, {transform_indices = @transform_3, window_bounds = array<i64: 8, 1024>}, {transform_indices = @transform_4, window_bounds = array<i64: 8, 1024>}]} {
    %c0 = arith.constant 0 : index
    %c0_0 = arith.constant 0 : index
    %0 = vector.load %arg2[%c0, %c0_0] : memref<8x1024xf32, #tpu.memory_space<vmem>>, vector<8x1024xf32>
    %c0_1 = arith.constant 0 : index
    %c0_2 = arith.constant 0 : index
    %1 = memref.load %arg1[%c0_1, %c0_2] : memref<2x2xf32, #tpu.memory_space<smem>>
    %2 = vector.broadcast %1 : f32 to vector<8x1024xf32>
    %3 = arith.mulf %0, %2 : vector<8x1024xf32>
    %c0_3 = arith.constant 0 : index
    %c0_4 = arith.constant 0 : index
    %4 = vector.load %arg3[%c0_3, %c0_4] : memref<8x1024xf32, #tpu.memory_space<vmem>>, vector<8x1024xf32>
    %c1 = arith.constant 1 : index
    %c0_5 = arith.constant 0 : index
    %5 = memref.load %arg1[%c1, %c0_5] : memref<2x2xf32, #tpu.memory_space<smem>>
    %6 = vector.broadcast %5 : f32 to vector<8x1024xf32>
    %7 = arith.mulf %4, %6 : vector<8x1024xf32>
    %8 = arith.addf %3, %7 : vector<8x1024xf32>
    %c0_6 = arith.constant 0 : index
    %c0_7 = arith.constant 0 : index
    %9 = vector.load %arg4[%c0_6, %c0_7] : memref<8x1024xf32, #tpu.memory_space<vmem>>, vector<8x1024xf32>
    tpu.vector_store %arg4[%c0_6, %c0_7], %8 {strides = array<i32>} : memref<8x1024xf32, #tpu.memory_space<vmem>>, vector<8x1024xf32>,
    %c0_8 = arith.constant 0 : index
    %c0_9 = arith.constant 0 : index
    %10 = vector.load %arg2[%c0_8, %c0_9] : memref<8x1024xf32, #tpu.memory_space<vmem>>, vector<8x1024xf32>
    %c0_10 = arith.constant 0 : index
    %c1_11 = arith.constant 1 : index
    %11 = memref.load %arg1[%c0_10, %c1_11] : memref<2x2xf32, #tpu.memory_space<smem>>
    %12 = vector.broadcast %11 : f32 to vector<8x1024xf32>
    %13 = arith.mulf %10, %12 : vector<8x1024xf32>
    %c0_12 = arith.constant 0 : index
    %c0_13 = arith.constant 0 : index
    %14 = vector.load %arg3[%c0_12, %c0_13] : memref<8x1024xf32, #tpu.memory_space<vmem>>, vector<8x1024xf32>
    %c1_14 = arith.constant 1 : index
    %c1_15 = arith.constant 1 : index
    %15 = memref.load %arg1[%c1_14, %c1_15] : memref<2x2xf32, #tpu.memory_space<smem>>
    %16 = vector.broadcast %15 : f32 to vector<8x1024xf32>
    %17 = arith.mulf %14, %16 : vector<8x1024xf32>
    %18 = arith.addf %13, %17 : vector<8x1024xf32>
    %c0_16 = arith.constant 0 : index
    %c0_17 = arith.constant 0 : index
    %19 = vector.load %arg5[%c0_16, %c0_17] : memref<8x1024xf32, #tpu.memory_space<vmem>>, vector<8x1024xf32>
    tpu.vector_store %arg5[%c0_16, %c0_17], %18 {strides = array<i32>} : memref<8x1024xf32, #tpu.memory_space<vmem>>, vector<8x1024xf32>,
    return
  }
  func.func @transform_0(%arg0: i32) -> (i32, i32) {
    %c0_i32 = arith.constant 0 : i32
    %c0_i32_0 = arith.constant 0 : i32
    %c0_i32_1 = arith.constant 0 : i32
    return %c0_i32, %c0_i32_0 : i32, i32
  }
  func.func @transform_1(%arg0: i32) -> (i32, i32) {
    %c0_i32 = arith.constant 0 : i32
    %c0_i32_0 = arith.constant 0 : i32
    return %arg0, %c0_i32 : i32, i32
  }
  func.func @transform_2(%arg0: i32) -> (i32, i32) {
    %c0_i32 = arith.constant 0 : i32
    %c0_i32_0 = arith.constant 0 : i32
    return %arg0, %c0_i32 : i32, i32
  }
  func.func @transform_3(%arg0: i32) -> (i32, i32) {
    %c0_i32 = arith.constant 0 : i32
    %c0_i32_0 = arith.constant 0 : i32
    return %arg0, %c0_i32 : i32, i32
  }
  func.func @transform_4(%arg0: i32) -> (i32, i32) {
    %c0_i32 = arith.constant 0 : i32
    %c0_i32_0 = arith.constant 0 : i32
    return %arg0, %c0_i32 : i32, i32
  }
}

</mosaic_0001>

<llo_original>
// kernel: tpu_custom_call.1
$region0: #{tpu_custom_call.1}
  #allocation0 [shape = 'u32[]', space=smem, size = 0x4, offset = 0x4, fixed_abs, tag = 'smem constant byte address 0x4 - core index']
  #allocation1 [shape = 'u32[144,128]{1,0:T(1,128)}', space=vmem, size = 0x12000, scoped, tag = 'internal scratch']
  %s0 = inlined_call_operand.hbm [shape: f32[2,2], index: 0, kind: input, shape index: {}]
  %s1 = inlined_call_operand.hbm [shape: f32[16,1024], index: 1, kind: input, shape index: {}]
  %s2 = inlined_call_operand.hbm [shape: f32[16,1024], index: 2, kind: input, shape index: {}]
  %s3 = inlined_call_operand.hbm [shape: f32[16,1024], index: 3, kind: output, shape index: {0}]
  %s4 = inlined_call_operand.hbm [shape: f32[16,1024], index: 4, kind: output, shape index: {1}]
  %5 = xla_tuple %s3, %s4
  %s6 = sld [smem:[#allocation0]]
  $region65: #{tpu_custom_call.1} parent=0
    _
  %s8 = ssub.s32 1, %s6
  %s9 = scalar_select 0, %s8, %s6
  $region1: #{tpu_custom_call.1} parent=0
    #allocation2 [shape = 'u8[1024]{0}', space=smem, size = 0x400, scoped, tag = 'input window, operand 0, single buffered']
    #allocation3 [shape = 's32[2]{0}', space=sflag, size = 0x8, scoped, tag = 'scoped memory for tpu_custom_call.1']
    #allocation4 [shape = 's32[2]{0}', space=sflag, size = 0x8, scoped, tag = 'scoped memory for tpu_custom_call.1']
    #allocation5 [shape = 's32[2]{0}', space=sflag, size = 0x8, scoped, tag = 'scoped memory for tpu_custom_call.1']
    #allocation6 [shape = 'u8[65536]{0}', space=vmem, size = 0x10000, scoped, tag = 'input window, operand 1']
    #allocation7 [shape = 'u8[65536]{0}', space=vmem, size = 0x10000, scoped, tag = 'input window, operand 2']
    #allocation8 [shape = 's32[2]{0}', space=sflag, size = 0x8, scoped, tag = 'scoped memory for tpu_custom_call.1']
    #allocation9 [shape = 'u8[65536]{0}', space=vmem, size = 0x10000, scoped, tag = 'output window, operand 0']
    #allocation10 [shape = 'u8[65536]{0}', space=vmem, size = 0x10000, scoped, tag = 'output window, operand 1']
    #allocation11 [shape = 's32[2]{0}', space=sflag, size = 0x8, scoped, tag = 'scoped memory for tpu_custom_call.1']
    %10 = vsyncpa [#allocation5], 0
    %11 = vsyncpa [#allocation3], 0
    %s12 = scalar_lea.sflag [#allocation3], 1
    %13 = vsyncpa %s12, 0
    %14 = vsyncpa [#allocation8], 0
    %s15 = scalar_lea.sflag [#allocation8], 1
    %16 = vsyncpa %s15, 0
    %17 = vsyncpa [#allocation4], 0
    %s18 = scalar_lea.sflag [#allocation4], 1
    %19 = vsyncpa %s18, 0
    %20 = vsyncpa [#allocation11], 0
    %s21 = scalar_lea.sflag [#allocation11], 1
    %22 = vsyncpa %s21, 0
    loop: start=0, step=1, limit=4
    $region2: #{tpu_custom_call.1} parent=1 // loop_pre_header
      _
    $region3: #{tpu_custom_call.1} parent=1 // loop_header
      %s24 = sphi 0, %s28
      %p25 = scmp.ge.s32.totalorder %s24, 4
      %s32 = sphi 0, %s32
      %s34 = sphi 0, %s32
      %s35 = sphi 0, %s34
      %s49 = sphi 0, %s35
      %s55 = sphi 0, %s57
      %s58 = sphi 0, %s55
      %s59 = sphi 0, %s58
      %s75 = sphi 0, %s59
      %s81 = sphi 0, %s83
      %s84 = sphi 0, %s81
      %s85 = sphi 0, %s84
      %s101 = sphi 0, %s85
      %s107 = sphi 0, %s109
      %s110 = sphi 0, %s107
      %s111 = sphi 0, %s110
      %s127 = sphi 0, %s111
      %s133 = sphi 0, %s135
      %s136 = sphi 0, %s133
      %s137 = sphi 0, %s136
      %s153 = sphi 0, %s137
    $region4: #{tpu_custom_call.1} parent=1 // loop_header_branch
      %27 = sbr.rel (%p25) target = $region8
    $region5: #{tpu_custom_call.1} parent=1 // loop_body
      %s29 = ssub.s32 %s24, 1
      %s30 = ssub.s32 %s24, 2
      %s31 = sadd.s32 %s24, 1
      %s33 = sadd.s32 %s32, 1
      %p36 = scmp.eq.s32.totalorder %s24, 1
      %p37 = scmp.ne.s32.totalorder %s32, %s34
      %p38 = scmp.eq.s32.totalorder %s24, 0
      %p39 = por %p37, %p38
      %p40 = scmp.ne.s32.totalorder %s32, %s34
      %p41 = scmp.eq.s32.totalorder %s29, 1
      %p42 = por %p40, %p41
      %p43 = scmp.ne.s32.totalorder %s34, %s35
      %p44 = scmp.eq.s32.totalorder %s29, 0
      %p45 = por %p43, %p44
      %p46 = scmp.ne.s32.totalorder %s34, %s35
      %p47 = scmp.eq.s32.totalorder %s30, 1
      %p48 = por %p46, %p47
      %p50 = scmp.ne.s32.totalorder %s35, %s49
      %p51 = scmp.eq.s32.totalorder %s30, 0
      %p52 = por %p50, %p51
      %s53 = ssub.s32 %s24, %s31
      %p54 = scmp.eq.s32.totalorder %s53, 0
      %s56 = sadd.s32 %s55, 1
      %s57 = scalar_select %p54, %s55, %s56
      %p60 = pneg %p54
      %p61 = scmp.eq.s32.totalorder %s24, 1
      %p62 = por %p60, %p61
      %p63 = scmp.ne.s32.totalorder %s55, %s58
      %p64 = scmp.eq.s32.totalorder %s24, 0
      %p65 = por %p63, %p64
      %p66 = scmp.ne.s32.totalorder %s55, %s58
      %p67 = scmp.eq.s32.totalorder %s29, 1
      %p68 = por %p66, %p67
      %p69 = scmp.ne.s32.totalorder %s58, %s59
      %p70 = scmp.eq.s32.totalorder %s29, 0
      %p71 = por %p69, %p70
      %p72 = scmp.ne.s32.totalorder %s58, %s59
      %p73 = scmp.eq.s32.totalorder %s30, 1
      %p74 = por %p72, %p73
      %p76 = scmp.ne.s32.totalorder %s59, %s75
      %p77 = scmp.eq.s32.totalorder %s30, 0
      %p78 = por %p76, %p77
      %s79 = ssub.s32 %s24, %s31
      %p80 = scmp.eq.s32.totalorder %s79, 0
      %s82 = sadd.s32 %s81, 1
      %s83 = scalar_select %p80, %s81, %s82
      %p86 = pneg %p80
      %p87 = scmp.eq.s32.totalorder %s24, 1
      %p88 = por %p86, %p87
      %p89 = scmp.ne.s32.totalorder %s81, %s84
      %p90 = scmp.eq.s32.totalorder %s24, 0
      %p91 = por %p89, %p90
      %p92 = scmp.ne.s32.totalorder %s81, %s84
      %p93 = scmp.eq.s32.totalorder %s29, 1
      %p94 = por %p92, %p93
      %p95 = scmp.ne.s32.totalorder %s84, %s85
      %p96 = scmp.eq.s32.totalorder %s29, 0
      %p97 = por %p95, %p96
      %p98 = scmp.ne.s32.totalorder %s84, %s85
      %p99 = scmp.eq.s32.totalorder %s30, 1
      %p100 = por %p98, %p99
      %p102 = scmp.ne.s32.totalorder %s85, %s101
      %p103 = scmp.eq.s32.totalorder %s30, 0
      %p104 = por %p102, %p103
      %s105 = ssub.s32 %s24, %s31
      %p106 = scmp.eq.s32.totalorder %s105, 0
      %s108 = sadd.s32 %s107, 1
      %s109 = scalar_select %p106, %s107, %s108
      %p112 = pneg %p106
      %p113 = scmp.eq.s32.totalorder %s24, 1
      %p114 = por %p112, %p113
      %p115 = scmp.ne.s32.totalorder %s107, %s110
      %p116 = scmp.eq.s32.totalorder %s24, 0
      %p117 = por %p115, %p116
      %p118 = scmp.ne.s32.totalorder %s107, %s110
      %p119 = scmp.eq.s32.totalorder %s29, 1
      %p120 = por %p118, %p119
      %p121 = scmp.ne.s32.totalorder %s110, %s111
      %p122 = scmp.eq.s32.totalorder %s29, 0
      %p123 = por %p121, %p122
      %p124 = scmp.ne.s32.totalorder %s110, %s111
      %p125 = scmp.eq.s32.totalorder %s30, 1
      %p126 = por %p124, %p125
      %p128 = scmp.ne.s32.totalorder %s111, %s127
      %p129 = scmp.eq.s32.totalorder %s30, 0
      %p130 = por %p128, %p129
      %s131 = ssub.s32 %s24, %s31
      %p132 = scmp.eq.s32.totalorder %s131, 0
      %s134 = sadd.s32 %s133, 1
      %s135 = scalar_select %p132, %s133, %s134
      %p138 = pneg %p132
      %p139 = scmp.eq.s32.totalorder %s24, 1
      %p140 = por %p138, %p139
      %p141 = scmp.ne.s32.totalorder %s133, %s136
      %p142 = scmp.eq.s32.totalorder %s24, 0
      %p143 = por %p141, %p142
      %p144 = scmp.ne.s32.totalorder %s133, %s136
      %p145 = scmp.eq.s32.totalorder %s29, 1
      %p146 = por %p144, %p145
      %p147 = scmp.ne.s32.totalorder %s136, %s137
      %p148 = scmp.eq.s32.totalorder %s29, 0
      %p149 = por %p147, %p148
      %p150 = scmp.ne.s32.totalorder %s136, %s137
      %p151 = scmp.eq.s32.totalorder %s30, 1
      %p152 = por %p150, %p151
      %p154 = scmp.ne.s32.totalorder %s137, %s153
      %p155 = scmp.eq.s32.totalorder %s30, 0
      %p156 = por %p154, %p155
      %p157 = scmp.le.s32.totalorder 1, %s24
      %p158 = scmp.lt.s32.totalorder %s24, 3
      %p159 = pnand %p157, %p158
      %p160 = pneg %p159
      // Predicated region
      $region9: #{tpu_custom_call.1} parent=5 // pred_check
        _
      $region10: #{tpu_custom_call.1} parent=5 // pred_check_branch
        %162 = sbr.rel (%p159) target = $region12
      $region11: #{tpu_custom_call.1} parent=5 // pred_region
        %s163 = ssub.s32 %s24, 1
        // Predicated region
        $region13: #{tpu_custom_call.1} parent=11 // pred_check
          %p164 = pneg %p45
        $region14: #{tpu_custom_call.1} parent=11 // pred_check_branch
          %166 = sbr.rel (%p164) target = $region16
        $region15: #{tpu_custom_call.1} parent=11 // pred_region
          %s168 = ssub.s32 32, 32
          %169 = vsyncadd [#allocation5], %s168
          %172 = dma.hbm_to_smem %s0, 32, [#allocation2], [#allocation5]
        $region16: #{tpu_custom_call.1} parent=11 // pred_fallthru
          _
      $region12: #{tpu_custom_call.1} parent=5 // pred_fallthru
        _
      %p173 = scmp.lt.s32.totalorder %s24, 2
      // Predicated region
      $region17: #{tpu_custom_call.1} parent=5 // pred_check
        %p174 = pneg %p173
      $region18: #{tpu_custom_call.1} parent=5 // pred_check_branch
        %176 = sbr.rel (%p174) target = $region20
      $region19: #{tpu_custom_call.1} parent=5 // pred_region
        // Predicated region
        $region21: #{tpu_custom_call.1} parent=19 // pred_check
          %p177 = pneg %p65
        $region22: #{tpu_custom_call.1} parent=19 // pred_check_branch
          %179 = sbr.rel (%p177) target = $region24
        $region23: #{tpu_custom_call.1} parent=19 // pred_region
          %s180 = sand.u32 %s55, 1
          %s181 = scalar_lea.sflag [#allocation3], %s180
          %s182 = sand.u32 %s55, 1
          %s183 = smul.addr %s182, 64
          %s184 = scalar_lea.vmem [#allocation6], %s183
          %s186 = ssub.s32 1024, 1024
          %187 = vsyncadd %s181, %s186
          %s188 = smul.addr %s24, 8
          %s189 = smul.addr %s188, 128
          %s190 = scalar_lea.hbm %s1, %s189
          %s192 = sshll.u32 %s184, 4
          %s193 = int_to_ptr.vmem [resolvable:$true] %s192
          %195 = dma.hbm_to_vmem [thread:$0]  %s190, 1024, %s193, %s181
        $region24: #{tpu_custom_call.1} parent=19 // pred_fallthru
          _
        // Predicated region
        $region25: #{tpu_custom_call.1} parent=19 // pred_check
          %p196 = pneg %p91
        $region26: #{tpu_custom_call.1} parent=19 // pred_check_branch
          %198 = sbr.rel (%p196) target = $region28
        $region27: #{tpu_custom_call.1} parent=19 // pred_region
          %s199 = sand.u32 %s81, 1
          %s200 = scalar_lea.sflag [#allocation8], %s199
          %s201 = sand.u32 %s81, 1
          %s202 = smul.addr %s201, 64
          %s203 = scalar_lea.vmem [#allocation7], %s202
          %s205 = ssub.s32 1024, 1024
          %206 = vsyncadd %s200, %s205
          %s207 = smul.addr %s24, 8
          %s208 = smul.addr %s207, 128
          %s209 = scalar_lea.hbm %s2, %s208
          %s211 = sshll.u32 %s203, 4
          %s212 = int_to_ptr.vmem [resolvable:$true] %s211
          %214 = dma.hbm_to_vmem [thread:$0]  %s209, 1024, %s212, %s200
        $region28: #{tpu_custom_call.1} parent=19 // pred_fallthru
          _
      $region20: #{tpu_custom_call.1} parent=5 // pred_fallthru
        _
      %p215 = scmp.le.s32.totalorder 1, %s24
      %p216 = scmp.lt.s32.totalorder %s24, 3
      %p217 = pnand %p215, %p216
      %p218 = pneg %p217
      // Predicated region
      $region29: #{tpu_custom_call.1} parent=5 // pred_check
        _
      $region30: #{tpu_custom_call.1} parent=5 // pred_check_branch
        %220 = sbr.rel (%p217) target = $region32
      $region31: #{tpu_custom_call.1} parent=5 // pred_region
        %s221 = ssub.s32 %s24, 1
        // Predicated region
        $region33: #{tpu_custom_call.1} parent=31 // pred_check
          %p222 = pneg %p45
        $region34: #{tpu_custom_call.1} parent=31 // pred_check_branch
          %224 = sbr.rel (%p222) target = $region36
        $region35: #{tpu_custom_call.1} parent=31 // pred_region
          %225 = dma.done [#allocation5], 32
        $region36: #{tpu_custom_call.1} parent=31 // pred_fallthru
          _
        %s226 = sand.u32 %s58, 1
        %s227 = scalar_lea.sflag [#allocation3], %s226
        %s228 = sand.u32 %s58, 1
        %s229 = smul.addr %s228, 64
        %s230 = scalar_lea.vmem [#allocation6], %s229
        // Predicated region
        $region37: #{tpu_custom_call.1} parent=31 // pred_check
          %p231 = pneg %p71
        $region38: #{tpu_custom_call.1} parent=31 // pred_check_branch
          %233 = sbr.rel (%p231) target = $region40
        $region39: #{tpu_custom_call.1} parent=31 // pred_region
          %234 = dma.done %s227, 1024
        $region40: #{tpu_custom_call.1} parent=31 // pred_fallthru
          _
        %s235 = sand.u32 %s84, 1
        %s236 = scalar_lea.sflag [#allocation8], %s235
        %s237 = sand.u32 %s84, 1
        %s238 = smul.addr %s237, 64
        %s239 = scalar_lea.vmem [#allocation7], %s238
        // Predicated region
        $region41: #{tpu_custom_call.1} parent=31 // pred_check
          %p240 = pneg %p97
        $region42: #{tpu_custom_call.1} parent=31 // pred_check_branch
          %242 = sbr.rel (%p240) target = $region44
        $region43: #{tpu_custom_call.1} parent=31 // pred_region
          %243 = dma.done %s236, 1024
        $region44: #{tpu_custom_call.1} parent=31 // pred_fallthru
          _
        %244 = sfence
        %p245 = pneg %p45
        %p246 = pneg %p42
        %s247 = sand.u32 %s58, 1
        %s248 = scalar_lea.sflag [#allocation3], %s247
        %s249 = sand.u32 %s58, 1
        %s250 = smul.addr %s249, 64
        %s251 = scalar_lea.vmem [#allocation6], %s250
        %p252 = pneg %p71
        %p253 = pneg %p68
        %s254 = sand.u32 %s84, 1
        %s255 = scalar_lea.sflag [#allocation8], %s254
        %s256 = sand.u32 %s84, 1
        %s257 = smul.addr %s256, 64
        %s258 = scalar_lea.vmem [#allocation7], %s257
        %p259 = pneg %p97
        %p260 = pneg %p94
        %p261 = pneg %p123
        %p262 = pneg %p120
        %s263 = sand.u32 %s110, 1
        %s264 = scalar_lea.sflag [#allocation4], %s263
        %s265 = sand.u32 %s110, 1
        %s266 = smul.addr %s265, 64
        %s267 = scalar_lea.vmem [#allocation9], %s266
        %p268 = pneg %p149
        %p269 = pneg %p146
        %s270 = sand.u32 %s136, 1
        %s271 = scalar_lea.sflag [#allocation11], %s270
        %s272 = sand.u32 %s136, 1
        %s273 = smul.addr %s272, 64
        %s274 = scalar_lea.vmem [#allocation10], %s273
        %v275 = vld [vmem:[%s230] sm:$0xff]
        %v276 = vld [vmem:[%s230 + $0x8] sm:$0xff]
        %v277 = vld [vmem:[%s230 + $0x10] sm:$0xff]
        %v278 = vld [vmem:[%s230 + $0x18] sm:$0xff]
        %v279 = vld [vmem:[%s230 + $0x20] sm:$0xff]
        %v280 = vld [vmem:[%s230 + $0x28] sm:$0xff]
        %v281 = vld [vmem:[%s230 + $0x30] sm:$0xff]
        %v282 = vld [vmem:[%s230 + $0x38] sm:$0xff]
        %s283 = sld [smem:[#allocation2]]
        %v284 = vstv %s283
        %v285 = vmul.f32 %v275, %v284
        %v286 = vmul.f32 %v276, %v284
        %v287 = vmul.f32 %v277, %v284
        %v288 = vmul.f32 %v278, %v284
        %v289 = vmul.f32 %v279, %v284
        %v290 = vmul.f32 %v280, %v284
        %v291 = vmul.f32 %v281, %v284
        %v292 = vmul.f32 %v282, %v284
        %v293 = vld [vmem:[%s239] sm:$0xff]
        %v294 = vld [vmem:[%s239 + $0x8] sm:$0xff]
        %v295 = vld [vmem:[%s239 + $0x10] sm:$0xff]
        %v296 = vld [vmem:[%s239 + $0x18] sm:$0xff]
        %v297 = vld [vmem:[%s239 + $0x20] sm:$0xff]
        %v298 = vld [vmem:[%s239 + $0x28] sm:$0xff]
        %v299 = vld [vmem:[%s239 + $0x30] sm:$0xff]
        %v300 = vld [vmem:[%s239 + $0x38] sm:$0xff]
        %s301 = sld [smem:[#allocation2 + $0x80]]
        %v302 = vstv %s301
        %v303 = vmul.f32 %v293, %v302
        %v304 = vmul.f32 %v294, %v302
        %v305 = vmul.f32 %v295, %v302
        %v306 = vmul.f32 %v296, %v302
        %v307 = vmul.f32 %v297, %v302
        %v308 = vmul.f32 %v298, %v302
        %v309 = vmul.f32 %v299, %v302
        %v310 = vmul.f32 %v300, %v302
        %v311 = vadd.f32 %v285, %v303
        %v312 = vadd.f32 %v286, %v304
        %v313 = vadd.f32 %v287, %v305
        %v314 = vadd.f32 %v288, %v306
        %v315 = vadd.f32 %v289, %v307
        %v316 = vadd.f32 %v290, %v308
        %v317 = vadd.f32 %v291, %v309
        %v318 = vadd.f32 %v292, %v310
        %319 = vst [vmem:[%s267] sm:$0xff] %v311
        %320 = vst [vmem:[%s267 + $0x8] sm:$0xff] %v312
        %321 = vst [vmem:[%s267 + $0x10] sm:$0xff] %v313
        %322 = vst [vmem:[%s267 + $0x18] sm:$0xff] %v314
        %323 = vst [vmem:[%s267 + $0x20] sm:$0xff] %v315
        %324 = vst [vmem:[%s267 + $0x28] sm:$0xff] %v316
        %325 = vst [vmem:[%s267 + $0x30] sm:$0xff] %v317
        %326 = vst [vmem:[%s267 + $0x38] sm:$0xff] %v318
        %v327 = vld [vmem:[%s230] sm:$0xff]
        %v328 = vld [vmem:[%s230 + $0x8] sm:$0xff]
        %v329 = vld [vmem:[%s230 + $0x10] sm:$0xff]
        %v330 = vld [vmem:[%s230 + $0x18] sm:$0xff]
        %v331 = vld [vmem:[%s230 + $0x20] sm:$0xff]
        %v332 = vld [vmem:[%s230 + $0x28] sm:$0xff]
        %v333 = vld [vmem:[%s230 + $0x30] sm:$0xff]
        %v334 = vld [vmem:[%s230 + $0x38] sm:$0xff]
        %s335 = sld [smem:[#allocation2 + $0x1]]
        %v336 = vstv %s335
        %v337 = vmul.f32 %v327, %v336
        %v338 = vmul.f32 %v328, %v336
        %v339 = vmul.f32 %v329, %v336
        %v340 = vmul.f32 %v330, %v336
        %v341 = vmul.f32 %v331, %v336
        %v342 = vmul.f32 %v332, %v336
        %v343 = vmul.f32 %v333, %v336
        %v344 = vmul.f32 %v334, %v336
        %v345 = vld [vmem:[%s239] sm:$0xff]
        %v346 = vld [vmem:[%s239 + $0x8] sm:$0xff]
        %v347 = vld [vmem:[%s239 + $0x10] sm:$0xff]
        %v348 = vld [vmem:[%s239 + $0x18] sm:$0xff]
        %v349 = vld [vmem:[%s239 + $0x20] sm:$0xff]
        %v350 = vld [vmem:[%s239 + $0x28] sm:$0xff]
        %v351 = vld [vmem:[%s239 + $0x30] sm:$0xff]
        %v352 = vld [vmem:[%s239 + $0x38] sm:$0xff]
        %s353 = sld [smem:[#allocation2 + $0x81]]
        %v354 = vstv %s353
        %v355 = vmul.f32 %v345, %v354
        %v356 = vmul.f32 %v346, %v354
        %v357 = vmul.f32 %v347, %v354
        %v358 = vmul.f32 %v348, %v354
        %v359 = vmul.f32 %v349, %v354
        %v360 = vmul.f32 %v350, %v354
        %v361 = vmul.f32 %v351, %v354
        %v362 = vmul.f32 %v352, %v354
        %v363 = vadd.f32 %v337, %v355
        %v364 = vadd.f32 %v338, %v356
        %v365 = vadd.f32 %v339, %v357
        %v366 = vadd.f32 %v340, %v358
        %v367 = vadd.f32 %v341, %v359
        %v368 = vadd.f32 %v342, %v360
        %v369 = vadd.f32 %v343, %v361
        %v370 = vadd.f32 %v344, %v362
        %371 = vst [vmem:[%s274] sm:$0xff] %v363
        %372 = vst [vmem:[%s274 + $0x8] sm:$0xff] %v364
        %373 = vst [vmem:[%s274 + $0x10] sm:$0xff] %v365
        %374 = vst [vmem:[%s274 + $0x18] sm:$0xff] %v366
        %375 = vst [vmem:[%s274 + $0x20] sm:$0xff] %v367
        %376 = vst [vmem:[%s274 + $0x28] sm:$0xff] %v368
        %377 = vst [vmem:[%s274 + $0x30] sm:$0xff] %v369
        %378 = vst [vmem:[%s274 + $0x38] sm:$0xff] %v370
        %s379 = sand.u32 %s110, 1
        %s380 = scalar_lea.sflag [#allocation4], %s379
        %s381 = sand.u32 %s110, 1
        %s382 = smul.addr %s381, 64
        %s383 = scalar_lea.vmem [#allocation9], %s382
        %s384 = sand.u32 %s136, 1
        %s385 = scalar_lea.sflag [#allocation11], %s384
        %s386 = sand.u32 %s136, 1
        %s387 = smul.addr %s386, 64
        %s388 = scalar_lea.vmem [#allocation10], %s387
        // Predicated region
        $region45: #{tpu_custom_call.1} parent=31 // pred_check
          %p389 = pneg %p120
        $region46: #{tpu_custom_call.1} parent=31 // pred_check_branch
          %391 = sbr.rel (%p389) target = $region48
        $region47: #{tpu_custom_call.1} parent=31 // pred_region
          %s393 = ssub.s32 1024, 1024
          %394 = vsyncadd %s380, %s393
          %s395 = smul.addr %s29, 8
          %s396 = smul.addr %s395, 128
          %s397 = scalar_lea.hbm %s3, %s396
          %s399 = sshll.u32 %s383, 4
          %s400 = int_to_ptr.vmem [resolvable:$true] %s399
          %402 = dma.vmem_to_hbm [thread:$0]  %s400, 1024, %s397, %s380
        $region48: #{tpu_custom_call.1} parent=31 // pred_fallthru
          _
        // Predicated region
        $region49: #{tpu_custom_call.1} parent=31 // pred_check
          %p403 = pneg %p146
        $region50: #{tpu_custom_call.1} parent=31 // pred_check_branch
          %405 = sbr.rel (%p403) target = $region52
        $region51: #{tpu_custom_call.1} parent=31 // pred_region
          %s407 = ssub.s32 1024, 1024
          %408 = vsyncadd %s385, %s407
          %s409 = smul.addr %s29, 8
          %s410 = smul.addr %s409, 128
          %s411 = scalar_lea.hbm %s4, %s410
          %s413 = sshll.u32 %s388, 4
          %s414 = int_to_ptr.vmem [resolvable:$true] %s413
          %416 = dma.vmem_to_hbm [thread:$0]  %s414, 1024, %s411, %s385
        $region52: #{tpu_custom_call.1} parent=31 // pred_fallthru
          _
      $region32: #{tpu_custom_call.1} parent=5 // pred_fallthru
        _
      %p417 = scmp.le.s32.totalorder 2, %s24
      // Predicated region
      $region53: #{tpu_custom_call.1} parent=5 // pred_check
        %p418 = pneg %p417
      $region54: #{tpu_custom_call.1} parent=5 // pred_check_branch
        %420 = sbr.rel (%p418) target = $region56
      $region55: #{tpu_custom_call.1} parent=5 // pred_region
        %s421 = ssub.s32 %s24, 2
        // Predicated region
        $region57: #{tpu_custom_call.1} parent=55 // pred_check
          %p422 = pneg %p126
        $region58: #{tpu_custom_call.1} parent=55 // pred_check_branch
          %424 = sbr.rel (%p422) target = $region60
        $region59: #{tpu_custom_call.1} parent=55 // pred_region
          %s425 = sand.u32 %s111, 1
          %s426 = scalar_lea.sflag [#allocation4], %s425
          %s427 = sand.u32 %s111, 1
          %s428 = smul.addr %s427, 64
          %s429 = scalar_lea.vmem [#allocation9], %s428
          %430 = dma.done %s426, 1024
        $region60: #{tpu_custom_call.1} parent=55 // pred_fallthru
          _
        // Predicated region
        $region61: #{tpu_custom_call.1} parent=55 // pred_check
          %p431 = pneg %p152
        $region62: #{tpu_custom_call.1} parent=55 // pred_check_branch
          %433 = sbr.rel (%p431) target = $region64
        $region63: #{tpu_custom_call.1} parent=55 // pred_region
          %s434 = sand.u32 %s137, 1
          %s435 = scalar_lea.sflag [#allocation11], %s434
          %s436 = sand.u32 %s137, 1
          %s437 = smul.addr %s436, 64
          %s438 = scalar_lea.vmem [#allocation10], %s437
          %439 = dma.done %s435, 1024
        $region64: #{tpu_custom_call.1} parent=55 // pred_fallthru
          _
      $region56: #{tpu_custom_call.1} parent=5 // pred_fallthru
        _
    $region6: #{tpu_custom_call.1} parent=1 // loop_footer
      %s28 = sadd.s32 1, %s24
    $region7: #{tpu_custom_call.1} parent=1 // loop_footer_branch
      %23 = sbr.rel target = $region3
    $region8: #{tpu_custom_call.1} parent=1 // loop_exit
      _
    %440 = vsyncpa [#allocation3], 1
    %s441 = scalar_lea.sflag [#allocation3], 1
    %442 = vsyncpa %s441, 1
    %443 = vsyncpa [#allocation8], 1
    %s444 = scalar_lea.sflag [#allocation8], 1
    %445 = vsyncpa %s444, 1
    %446 = vsyncpa [#allocation4], 1
    %s447 = scalar_lea.sflag [#allocation4], 1
    %448 = vsyncpa %s447, 1
    %449 = vsyncpa [#allocation11], 1
    %s450 = scalar_lea.sflag [#allocation11], 1
    %451 = vsyncpa %s450, 1
    %452 = vsyncpa [#allocation5], 1
    %s453 = scalar_lea.sflag [#allocation5], 1
    %454 = vsyncpa %s453, 1

</llo_original>
